<compile_context>
chip_gen: v6e
topology: v6e:2x2x1
jax: 0.10.0
libtpu: 0.0.40
codegen_flags: <defaults>
</compile_context>

<pallas_src>
import jax
import jax.numpy as jnp
from jax.experimental import pallas as pl
from jax.experimental.pallas import tpu as pltpu

NEG_SLOPE = 0.01   # PyTorch nn.LeakyReLU default negative_slope
LANE = 128         # TPU lane width


def _leaky_relu(x):
    # max(x, 0.01*x) == LeakyReLU(x) for slope in (0,1); one VALU op.
    return jnp.maximum(x, NEG_SLOPE * x)


def initializer_kernel(e_ref, w1_ref, b1_ref, w2_ref, b2_ref, w3_ref, b3_ref,
                       out_ref):
    """Fused Initializer forward for one row-tile of `e`.

    h = LeakyReLU(e @ W1 + b1); h = LeakyReLU(h @ W2 + b2); out = tanh(h @ W3 + b3)
    """
    h = _leaky_relu(
        jnp.dot(e_ref[...], w1_ref[...], preferred_element_type=jnp.float32)
        + b1_ref[...])
    h = _leaky_relu(
        jnp.dot(h, w2_ref[...], preferred_element_type=jnp.float32)
        + b2_ref[...])
    h = jnp.dot(h, w3_ref[...], preferred_element_type=jnp.float32) + b3_ref[...]
    out_ref[...] = jnp.tanh(h)


def prepare_params(params, lane=LANE):
    """One-time param prep (hoist out of the forward pass).

    Zero-pads BOTH the hidden dim and the output dim to multiples of `lane`.
    Exact: padded hidden units get bias 0 -> LeakyReLU(0)=0 and their downstream
    weight rows are 0; padded output columns are sliced off in the wrapper.
    Returns (padded_params, node_size).
    """
    w1, b1, w2, b2, w3, b3 = params
    node_size = w3.shape[1]
    h = w1.shape[1]
    hp = (-(-h // lane)) * lane
    op = (-(-node_size // lane)) * lane
    ph, po = hp - h, op - node_size
    padded = (
        jnp.pad(w1, ((0, 0), (0, ph))),
        jnp.pad(b1, ((0, 0), (0, ph))),
        jnp.pad(w2, ((0, ph), (0, ph))),
        jnp.pad(b2, ((0, 0), (0, ph))),
        jnp.pad(w3, ((0, ph), (0, po))),
        jnp.pad(b3, ((0, 0), (0, po))),
    )
    return padded, node_size


def _choose_block_rows(n_rows, cap=512):
    """Row-tile size: multiple of 8 (sublane), capped, and when possible chosen
    so the grid has >= 2 steps (keeps both v7x TensorCores busy)."""
    half = -(-n_rows // 2)            # cdiv(n_rows, 2)
    half = (-(-half // 8)) * 8        # round up to sublane multiple
    return max(8, min(cap, half))


def initializer_forward(e, prepared, *, block_rows=None):
    """Pallas-backed Initializer.forward: tanh(Linear3(e)). e: [N, feature_size].

    `prepared` is the output of prepare_params(params).
    """
    padded, node_size = prepared
    w1, b1, w2, b2, w3, b3 = padded
    n_rows, feat = e.shape
    hp = w1.shape[1]
    out_pad = w3.shape[1]

    if block_rows is None:
        block_rows = _choose_block_rows(n_rows)
    grid = (pl.cdiv(n_rows, block_rows),)   # ragged last block handled by Pallas

    def resident(shape):
        # Whole-array block, same block index every grid step -> DMA'd once,
        # stays VMEM-resident across the grid.
        return pl.BlockSpec(shape, lambda i: (0, 0))

    cost = pl.CostEstimate(
        flops=2 * n_rows * (feat * hp + hp * hp + hp * out_pad),
        transcendentals=n_rows * out_pad,
        bytes_accessed=4 * (n_rows * (feat + out_pad)
                            + feat * hp + hp * hp + hp * out_pad
                            + 2 * hp + out_pad),
    )

    out = pl.pallas_call(
        initializer_kernel,
        out_shape=jax.ShapeDtypeStruct((n_rows, out_pad), jnp.float32),
        grid_spec=pltpu.PrefetchScalarGridSpec(
            num_scalar_prefetch=0,
            grid=grid,
            in_specs=[
                pl.BlockSpec((block_rows, feat), lambda i: (i, 0)),
                resident(w1.shape), resident(b1.shape),
                resident(w2.shape), resident(b2.shape),
                resident(w3.shape), resident(b3.shape),
            ],
            # Lane-dense output tile (out_pad is a multiple of 128) -> unmasked vst.
            out_specs=pl.BlockSpec((block_rows, out_pad), lambda i: (i, 0)),
        ),
        compiler_params=pltpu.CompilerParams(
            dimension_semantics=("parallel",)),
        cost_estimate=cost,
    )(e, w1, b1, w2, b2, w3, b3)

    return out if out_pad == node_size else out[:, :node_size]


# ----------------------- pure-JAX reference ---------------------------------
def _lrelu_ref(x):
    return jnp.where(x >= 0, x, NEG_SLOPE * x)


def initializer_reference(e, params):
    w1, b1, w2, b2, w3, b3 = params
    h = _lrelu_ref(e @ w1 + b1)
    h = _lrelu_ref(h @ w2 + b2)
    return jnp.tanh(h @ w3 + b3)


# ----------------------- deterministic param init ---------------------------
def _init_linear(key, fan_in, fan_out):
    # matches PyTorch nn.Linear default init: U(-1/sqrt(fan_in), 1/sqrt(fan_in))
    bound = 1.0 / jnp.sqrt(jnp.float32(fan_in))
    kw, kb = jax.random.split(key)
    w = jax.random.uniform(kw, (fan_in, fan_out), jnp.float32, -bound, bound)
    b = jax.random.uniform(kb, (1, fan_out), jnp.float32, -bound, bound)
    return w, b


def _init_linear3(key, in_size, out_size):
    hidden = max(in_size, out_size)
    k1, k2, k3 = jax.random.split(key, 3)
    w1, b1 = _init_linear(k1, in_size, hidden)
    w2, b2 = _init_linear(k2, hidden, hidden)
    w3, b3 = _init_linear(k3, hidden, out_size)
    return (w1, b1, w2, b2, w3, b3)


if __name__ == "__main__":
    feature_size = 64   # Initializer default feature_size
    node_size = 32      # gn.node_size
    n_rows = 256        # batch of embedding vectors `e`

    root = jax.random.PRNGKey(0)
    k_e, k_p = jax.random.split(root)
    e = jax.random.normal(k_e, (n_rows, feature_size), jnp.float32)
    params = _init_linear3(k_p, feature_size, node_size)

    # Param padding hoisted out of the forward pass (done once).
    prepared = prepare_params(params)

    out = initializer_forward(e, prepared)
    out = jax.block_until_ready(out)

    ref = initializer_reference(e, params)
    assert out.shape == (n_rows, node_size)
    assert bool(jnp.isfinite(out).all())
    assert jnp.allclose(out, ref, rtol=1e-4, atol=1e-4), "mismatch vs reference"
    print("KERNEL_OK")
</pallas_src>

<mosaic_0001>
module attributes {stable_mosaic.version = 11 : i64} {
  func.func @initializer_kernel(%arg0: i32, %arg1: memref<128x64xf32, #tpu.memory_space<vmem>>, %arg2: memref<64x128xf32, #tpu.memory_space<vmem>>, %arg3: memref<1x128xf32, #tpu.memory_space<vmem>>, %arg4: memref<128x128xf32, #tpu.memory_space<vmem>>, %arg5: memref<1x128xf32, #tpu.memory_space<vmem>>, %arg6: memref<128x128xf32, #tpu.memory_space<vmem>>, %arg7: memref<1x128xf32, #tpu.memory_space<vmem>>, %arg8: memref<128x128xf32, #tpu.memory_space<vmem>>) attributes {dimension_semantics = [#tpu.dimension_semantics<parallel>], iteration_bounds = array<i64: 2>, scalar_prefetch = 0 : i64, scratch_operands = 0 : i64, tpu.core_type = #tpu.core_type<tc>, window_params = [{transform_indices = @transform_0, window_bounds = array<i64: 128, 64>}, {pipeline_mode = #tpu.pipeline_mode<synchronous>, transform_indices = @transform_1, window_bounds = array<i64: 64, 128>}, {pipeline_mode = #tpu.pipeline_mode<synchronous>, transform_indices = @transform_2, window_bounds = array<i64: 1, 128>}, {pipeline_mode = #tpu.pipeline_mode<synchronous>, transform_indices = @transform_3, window_bounds = array<i64: 128, 128>}, {pipeline_mode = #tpu.pipeline_mode<synchronous>, transform_indices = @transform_4, window_bounds = array<i64: 1, 128>}, {pipeline_mode = #tpu.pipeline_mode<synchronous>, transform_indices = @transform_5, window_bounds = array<i64: 128, 128>}, {pipeline_mode = #tpu.pipeline_mode<synchronous>, transform_indices = @transform_6, window_bounds = array<i64: 1, 128>}, {transform_indices = @transform_7, window_bounds = array<i64: 128, 128>}]} {
    %c0 = arith.constant 0 : index
    %c0_0 = arith.constant 0 : index
    %0 = vector.load %arg1[%c0, %c0_0] : memref<128x64xf32, #tpu.memory_space<vmem>>, vector<128x64xf32>
    %c0_1 = arith.constant 0 : index
    %c0_2 = arith.constant 0 : index
    %1 = vector.load %arg2[%c0_1, %c0_2] : memref<64x128xf32, #tpu.memory_space<vmem>>, vector<64x128xf32>
    %cst = arith.constant dense<0.000000e+00> : vector<128x128xf32>
    %2 = tpu.matmul %0, %1, %cst {dimension_numbers = #tpu.dot_dimension_numbers<[1], [0], [0], [1], [0, 0, 1, 1], [], []>} : vector<128x64xf32>, vector<64x128xf32>, vector<128x128xf32> -> vector<128x128xf32>
    %c0_3 = arith.constant 0 : index
    %c0_4 = arith.constant 0 : index
    %3 = vector.load %arg3[%c0_3, %c0_4] : memref<1x128xf32, #tpu.memory_space<vmem>>, vector<1x128xf32>
    %4 = vector.broadcast %3 : vector<1x128xf32> to vector<128x128xf32>
    %5 = arith.addf %2, %4 : vector<128x128xf32>
    %cst_5 = arith.constant 0.00999999977 : f32
    %6 = vector.broadcast %cst_5 : f32 to vector<128x128xf32>
    %7 = arith.mulf %6, %5 : vector<128x128xf32>
    %8 = arith.maximumf %5, %7 : vector<128x128xf32>
    %c0_6 = arith.constant 0 : index
    %c0_7 = arith.constant 0 : index
    %9 = vector.load %arg4[%c0_6, %c0_7] : memref<128x128xf32, #tpu.memory_space<vmem>>, vector<128x128xf32>
    %cst_8 = arith.constant dense<0.000000e+00> : vector<128x128xf32>
    %10 = tpu.matmul %8, %9, %cst_8 {dimension_numbers = #tpu.dot_dimension_numbers<[1], [0], [0], [1], [0, 0, 1, 1], [], []>} : vector<128x128xf32>, vector<128x128xf32>, vector<128x128xf32> -> vector<128x128xf32>
    %c0_9 = arith.constant 0 : index
    %c0_10 = arith.constant 0 : index
    %11 = vector.load %arg5[%c0_9, %c0_10] : memref<1x128xf32, #tpu.memory_space<vmem>>, vector<1x128xf32>
    %12 = vector.broadcast %11 : vector<1x128xf32> to vector<128x128xf32>
    %13 = arith.addf %10, %12 : vector<128x128xf32>
    %cst_11 = arith.constant 0.00999999977 : f32
    %14 = vector.broadcast %cst_11 : f32 to vector<128x128xf32>
    %15 = arith.mulf %14, %13 : vector<128x128xf32>
    %16 = arith.maximumf %13, %15 : vector<128x128xf32>
    %c0_12 = arith.constant 0 : index
    %c0_13 = arith.constant 0 : index
    %17 = vector.load %arg6[%c0_12, %c0_13] : memref<128x128xf32, #tpu.memory_space<vmem>>, vector<128x128xf32>
    %cst_14 = arith.constant dense<0.000000e+00> : vector<128x128xf32>
    %18 = tpu.matmul %16, %17, %cst_14 {dimension_numbers = #tpu.dot_dimension_numbers<[1], [0], [0], [1], [0, 0, 1, 1], [], []>} : vector<128x128xf32>, vector<128x128xf32>, vector<128x128xf32> -> vector<128x128xf32>
    %c0_15 = arith.constant 0 : index
    %c0_16 = arith.constant 0 : index
    %19 = vector.load %arg7[%c0_15, %c0_16] : memref<1x128xf32, #tpu.memory_space<vmem>>, vector<1x128xf32>
    %20 = vector.broadcast %19 : vector<1x128xf32> to vector<128x128xf32>
    %21 = arith.addf %18, %20 : vector<128x128xf32>
    %22 = math.tanh %21 : vector<128x128xf32>
    %c0_17 = arith.constant 0 : index
    %c0_18 = arith.constant 0 : index
    %23 = vector.load %arg8[%c0_17, %c0_18] : memref<128x128xf32, #tpu.memory_space<vmem>>, vector<128x128xf32>
    tpu.vector_store %arg8[%c0_17, %c0_18], %22 {strides = array<i32>} : memref<128x128xf32, #tpu.memory_space<vmem>>, vector<128x128xf32>,
    return
  }
  func.func @transform_0(%arg0: i32) -> (i32, i32) {
    %c0_i32 = arith.constant 0 : i32
    %c0_i32_0 = arith.constant 0 : i32
    return %arg0, %c0_i32 : i32, i32
  }
  func.func @transform_1(%arg0: i32) -> (i32, i32) {
    %c0_i32 = arith.constant 0 : i32
    %c0_i32_0 = arith.constant 0 : i32
    %c0_i32_1 = arith.constant 0 : i32
    return %c0_i32, %c0_i32_0 : i32, i32
  }
  func.func @transform_2(%arg0: i32) -> (i32, i32) {
    %c0_i32 = arith.constant 0 : i32
    %c0_i32_0 = arith.constant 0 : i32
    %c0_i32_1 = arith.constant 0 : i32
    return %c0_i32, %c0_i32_0 : i32, i32
  }
  func.func @transform_3(%arg0: i32) -> (i32, i32) {
    %c0_i32 = arith.constant 0 : i32
    %c0_i32_0 = arith.constant 0 : i32
    %c0_i32_1 = arith.constant 0 : i32
    return %c0_i32, %c0_i32_0 : i32, i32
  }
  func.func @transform_4(%arg0: i32) -> (i32, i32) {
    %c0_i32 = arith.constant 0 : i32
    %c0_i32_0 = arith.constant 0 : i32
    %c0_i32_1 = arith.constant 0 : i32
    return %c0_i32, %c0_i32_0 : i32, i32
  }
  func.func @transform_5(%arg0: i32) -> (i32, i32) {
    %c0_i32 = arith.constant 0 : i32
    %c0_i32_0 = arith.constant 0 : i32
    %c0_i32_1 = arith.constant 0 : i32
    return %c0_i32, %c0_i32_0 : i32, i32
  }
  func.func @transform_6(%arg0: i32) -> (i32, i32) {
    %c0_i32 = arith.constant 0 : i32
    %c0_i32_0 = arith.constant 0 : i32
    %c0_i32_1 = arith.constant 0 : i32
    return %c0_i32, %c0_i32_0 : i32, i32
  }
  func.func @transform_7(%arg0: i32) -> (i32, i32) {
    %c0_i32 = arith.constant 0 : i32
    %c0_i32_0 = arith.constant 0 : i32
    return %arg0, %c0_i32 : i32, i32
  }
}

</mosaic_0001>

<llo_original>
// kernel: tpu_custom_call.1
$region0: #{tpu_custom_call.1}
  #allocation0 [shape = 'u32[]', space=smem, size = 0x4, offset = 0x4, fixed_abs, tag = 'smem constant byte address 0x4 - core index']
  #allocation1 [shape = 'u32[144,128]{1,0:T(1,128)}', space=vmem, size = 0x12000, scoped, tag = 'internal scratch']
  %s0 = inlined_call_operand.vmem [shape: f32[256,64], index: 0, kind: input, shape index: {}]
  %s1 = inlined_call_operand.vmem [shape: f32[64,128], index: 1, kind: input, shape index: {}]
  %s2 = inlined_call_operand.vmem [shape: f32[1,128], index: 2, kind: input, shape index: {}]
  %s3 = inlined_call_operand.vmem [shape: f32[128,128], index: 3, kind: input, shape index: {}]
  %s4 = inlined_call_operand.vmem [shape: f32[1,128], index: 4, kind: input, shape index: {}]
  %s5 = inlined_call_operand.vmem [shape: f32[128,128], index: 5, kind: input, shape index: {}]
  %s6 = inlined_call_operand.vmem [shape: f32[1,128], index: 6, kind: input, shape index: {}]
  %s7 = inlined_call_operand.hbm [shape: f32[256,128], index: 7, kind: output, shape index: {}]
  %s8 = sld [smem:[#allocation0]]
  $region61: #{tpu_custom_call.1} parent=0
    _
  %s10 = ssub.s32 1, %s8
  %s11 = scalar_select 0, %s10, %s8
  $region1: #{tpu_custom_call.1} parent=0
    #allocation2 [shape = 'u8[131072]{0}', space=vmem, size = 0x20000, scoped, tag = 'output window, operand 0']
    #allocation3 [shape = 's32[2]{0}', space=sflag, size = 0x8, scoped, tag = 'scoped memory for tpu_custom_call.1']
    %12 = vsyncpa [#allocation3], 0
    %s13 = scalar_lea.sflag [#allocation3], 1
    %14 = vsyncpa %s13, 0
    loop: start=0, step=1, limit=4
    $region2: #{tpu_custom_call.1} parent=1 // loop_pre_header
      _
    $region3: #{tpu_custom_call.1} parent=1 // loop_header
      %s16 = sphi 0, %s20
      %p17 = scmp.ge.s32.totalorder %s16, 4
      %s26 = sphi 0, %s28
      %s29 = sphi 0, %s26
      %s30 = sphi 0, %s29
      %s46 = sphi 0, %s30
      %s50 = sphi 0, %s50
      %s52 = sphi 0, %s50
      %s53 = sphi 0, %s52
      %s67 = sphi 0, %s53
      %s71 = sphi 0, %s71
      %s73 = sphi 0, %s71
      %s74 = sphi 0, %s73
      %s88 = sphi 0, %s74
      %s92 = sphi 0, %s92
      %s94 = sphi 0, %s92
      %s95 = sphi 0, %s94
      %s109 = sphi 0, %s95
      %s113 = sphi 0, %s113
      %s115 = sphi 0, %s113
      %s116 = sphi 0, %s115
      %s130 = sphi 0, %s116
      %s134 = sphi 0, %s134
      %s136 = sphi 0, %s134
      %s137 = sphi 0, %s136
      %s151 = sphi 0, %s137
      %s155 = sphi 0, %s155
      %s157 = sphi 0, %s155
      %s158 = sphi 0, %s157
      %s172 = sphi 0, %s158
      %s178 = sphi 0, %s180
      %s181 = sphi 0, %s178
      %s182 = sphi 0, %s181
      %s198 = sphi 0, %s182
    $region4: #{tpu_custom_call.1} parent=1 // loop_header_branch
      %19 = sbr.rel (%p17) target = $region8
    $region5: #{tpu_custom_call.1} parent=1 // loop_body
      %s21 = ssub.s32 %s16, 1
      %s22 = ssub.s32 %s16, 2
      %s23 = sadd.s32 %s16, 1
      %s24 = ssub.s32 %s16, %s23
      %p25 = scmp.eq.s32.totalorder %s24, 0
      %s27 = sadd.s32 %s26, 1
      %s28 = scalar_select %p25, %s26, %s27
      %p31 = pneg %p25
      %p32 = scmp.eq.s32.totalorder %s16, 1
      %p33 = por %p31, %p32
      %p34 = scmp.ne.s32.totalorder %s26, %s29
      %p35 = scmp.eq.s32.totalorder %s16, 0
      %p36 = por %p34, %p35
      %p37 = scmp.ne.s32.totalorder %s26, %s29
      %p38 = scmp.eq.s32.totalorder %s21, 1
      %p39 = por %p37, %p38
      %p40 = scmp.ne.s32.totalorder %s29, %s30
      %p41 = scmp.eq.s32.totalorder %s21, 0
      %p42 = por %p40, %p41
      %p43 = scmp.ne.s32.totalorder %s29, %s30
      %p44 = scmp.eq.s32.totalorder %s22, 1
      %p45 = por %p43, %p44
      %p47 = scmp.ne.s32.totalorder %s30, %s46
      %p48 = scmp.eq.s32.totalorder %s22, 0
      %p49 = por %p47, %p48
      %s51 = sadd.s32 %s50, 1
      %p54 = scmp.eq.s32.totalorder %s16, 1
      %p55 = scmp.ne.s32.totalorder %s50, %s52
      %p56 = scmp.eq.s32.totalorder %s16, 0
      %p57 = por %p55, %p56
      %p58 = scmp.ne.s32.totalorder %s50, %s52
      %p59 = scmp.eq.s32.totalorder %s21, 1
      %p60 = por %p58, %p59
      %p61 = scmp.ne.s32.totalorder %s52, %s53
      %p62 = scmp.eq.s32.totalorder %s21, 0
      %p63 = por %p61, %p62
      %p64 = scmp.ne.s32.totalorder %s52, %s53
      %p65 = scmp.eq.s32.totalorder %s22, 1
      %p66 = por %p64, %p65
      %p68 = scmp.ne.s32.totalorder %s53, %s67
      %p69 = scmp.eq.s32.totalorder %s22, 0
      %p70 = por %p68, %p69
      %s72 = sadd.s32 %s71, 1
      %p75 = scmp.eq.s32.totalorder %s16, 1
      %p76 = scmp.ne.s32.totalorder %s71, %s73
      %p77 = scmp.eq.s32.totalorder %s16, 0
      %p78 = por %p76, %p77
      %p79 = scmp.ne.s32.totalorder %s71, %s73
      %p80 = scmp.eq.s32.totalorder %s21, 1
      %p81 = por %p79, %p80
      %p82 = scmp.ne.s32.totalorder %s73, %s74
      %p83 = scmp.eq.s32.totalorder %s21, 0
      %p84 = por %p82, %p83
      %p85 = scmp.ne.s32.totalorder %s73, %s74
      %p86 = scmp.eq.s32.totalorder %s22, 1
      %p87 = por %p85, %p86
      %p89 = scmp.ne.s32.totalorder %s74, %s88
      %p90 = scmp.eq.s32.totalorder %s22, 0
      %p91 = por %p89, %p90
      %s93 = sadd.s32 %s92, 1
      %p96 = scmp.eq.s32.totalorder %s16, 1
      %p97 = scmp.ne.s32.totalorder %s92, %s94
      %p98 = scmp.eq.s32.totalorder %s16, 0
      %p99 = por %p97, %p98
      %p100 = scmp.ne.s32.totalorder %s92, %s94
      %p101 = scmp.eq.s32.totalorder %s21, 1
      %p102 = por %p100, %p101
      %p103 = scmp.ne.s32.totalorder %s94, %s95
      %p104 = scmp.eq.s32.totalorder %s21, 0
      %p105 = por %p103, %p104
      %p106 = scmp.ne.s32.totalorder %s94, %s95
      %p107 = scmp.eq.s32.totalorder %s22, 1
      %p108 = por %p106, %p107
      %p110 = scmp.ne.s32.totalorder %s95, %s109
      %p111 = scmp.eq.s32.totalorder %s22, 0
      %p112 = por %p110, %p111
      %s114 = sadd.s32 %s113, 1
      %p117 = scmp.eq.s32.totalorder %s16, 1
      %p118 = scmp.ne.s32.totalorder %s113, %s115
      %p119 = scmp.eq.s32.totalorder %s16, 0
      %p120 = por %p118, %p119
      %p121 = scmp.ne.s32.totalorder %s113, %s115
      %p122 = scmp.eq.s32.totalorder %s21, 1
      %p123 = por %p121, %p122
      %p124 = scmp.ne.s32.totalorder %s115, %s116
      %p125 = scmp.eq.s32.totalorder %s21, 0
      %p126 = por %p124, %p125
      %p127 = scmp.ne.s32.totalorder %s115, %s116
      %p128 = scmp.eq.s32.totalorder %s22, 1
      %p129 = por %p127, %p128
      %p131 = scmp.ne.s32.totalorder %s116, %s130
      %p132 = scmp.eq.s32.totalorder %s22, 0
      %p133 = por %p131, %p132
      %s135 = sadd.s32 %s134, 1
      %p138 = scmp.eq.s32.totalorder %s16, 1
      %p139 = scmp.ne.s32.totalorder %s134, %s136
      %p140 = scmp.eq.s32.totalorder %s16, 0
      %p141 = por %p139, %p140
      %p142 = scmp.ne.s32.totalorder %s134, %s136
      %p143 = scmp.eq.s32.totalorder %s21, 1
      %p144 = por %p142, %p143
      %p145 = scmp.ne.s32.totalorder %s136, %s137
      %p146 = scmp.eq.s32.totalorder %s21, 0
      %p147 = por %p145, %p146
      %p148 = scmp.ne.s32.totalorder %s136, %s137
      %p149 = scmp.eq.s32.totalorder %s22, 1
      %p150 = por %p148, %p149
      %p152 = scmp.ne.s32.totalorder %s137, %s151
      %p153 = scmp.eq.s32.totalorder %s22, 0
      %p154 = por %p152, %p153
      %s156 = sadd.s32 %s155, 1
      %p159 = scmp.eq.s32.totalorder %s16, 1
      %p160 = scmp.ne.s32.totalorder %s155, %s157
      %p161 = scmp.eq.s32.totalorder %s16, 0
      %p162 = por %p160, %p161
      %p163 = scmp.ne.s32.totalorder %s155, %s157
      %p164 = scmp.eq.s32.totalorder %s21, 1
      %p165 = por %p163, %p164
      %p166 = scmp.ne.s32.totalorder %s157, %s158
      %p167 = scmp.eq.s32.totalorder %s21, 0
      %p168 = por %p166, %p167
      %p169 = scmp.ne.s32.totalorder %s157, %s158
      %p170 = scmp.eq.s32.totalorder %s22, 1
      %p171 = por %p169, %p170
      %p173 = scmp.ne.s32.totalorder %s158, %s172
      %p174 = scmp.eq.s32.totalorder %s22, 0
      %p175 = por %p173, %p174
      %s176 = ssub.s32 %s16, %s23
      %p177 = scmp.eq.s32.totalorder %s176, 0
      %s179 = sadd.s32 %s178, 1
      %s180 = scalar_select %p177, %s178, %s179
      %p183 = pneg %p177
      %p184 = scmp.eq.s32.totalorder %s16, 1
      %p185 = por %p183, %p184
      %p186 = scmp.ne.s32.totalorder %s178, %s181
      %p187 = scmp.eq.s32.totalorder %s16, 0
      %p188 = por %p186, %p187
      %p189 = scmp.ne.s32.totalorder %s178, %s181
      %p190 = scmp.eq.s32.totalorder %s21, 1
      %p191 = por %p189, %p190
      %p192 = scmp.ne.s32.totalorder %s181, %s182
      %p193 = scmp.eq.s32.totalorder %s21, 0
      %p194 = por %p192, %p193
      %p195 = scmp.ne.s32.totalorder %s181, %s182
      %p196 = scmp.eq.s32.totalorder %s22, 1
      %p197 = por %p195, %p196
      %p199 = scmp.ne.s32.totalorder %s182, %s198
      %p200 = scmp.eq.s32.totalorder %s22, 0
      %p201 = por %p199, %p200
      %p202 = scmp.le.s32.totalorder 1, %s16
      %p203 = scmp.lt.s32.totalorder %s16, 3
      %p204 = pnand %p202, %p203
      %p205 = pneg %p204
      // Predicated region
      $region9: #{tpu_custom_call.1} parent=5 // pred_check
        _
      $region10: #{tpu_custom_call.1} parent=5 // pred_check_branch
        %207 = sbr.rel (%p204) target = $region12
      $region11: #{tpu_custom_call.1} parent=5 // pred_region
        %s208 = ssub.s32 %s16, 1
        // Predicated region
        $region13: #{tpu_custom_call.1} parent=11 // pred_check
          %p209 = pneg %p63
        $region14: #{tpu_custom_call.1} parent=11 // pred_check_branch
          %211 = sbr.rel (%p209) target = $region16
        $region15: #{tpu_custom_call.1} parent=11 // pred_region
          _
        $region16: #{tpu_custom_call.1} parent=11 // pred_fallthru
          _
        // Predicated region
        $region17: #{tpu_custom_call.1} parent=11 // pred_check
          %p212 = pneg %p84
        $region18: #{tpu_custom_call.1} parent=11 // pred_check_branch
          %214 = sbr.rel (%p212) target = $region20
        $region19: #{tpu_custom_call.1} parent=11 // pred_region
          _
        $region20: #{tpu_custom_call.1} parent=11 // pred_fallthru
          _
        // Predicated region
        $region21: #{tpu_custom_call.1} parent=11 // pred_check
          %p215 = pneg %p105
        $region22: #{tpu_custom_call.1} parent=11 // pred_check_branch
          %217 = sbr.rel (%p215) target = $region24
        $region23: #{tpu_custom_call.1} parent=11 // pred_region
          _
        $region24: #{tpu_custom_call.1} parent=11 // pred_fallthru
          _
        // Predicated region
        $region25: #{tpu_custom_call.1} parent=11 // pred_check
          %p218 = pneg %p126
        $region26: #{tpu_custom_call.1} parent=11 // pred_check_branch
          %220 = sbr.rel (%p218) target = $region28
        $region27: #{tpu_custom_call.1} parent=11 // pred_region
          _
        $region28: #{tpu_custom_call.1} parent=11 // pred_fallthru
          _
        // Predicated region
        $region29: #{tpu_custom_call.1} parent=11 // pred_check
          %p221 = pneg %p147
        $region30: #{tpu_custom_call.1} parent=11 // pred_check_branch
          %223 = sbr.rel (%p221) target = $region32
        $region31: #{tpu_custom_call.1} parent=11 // pred_region
          _
        $region32: #{tpu_custom_call.1} parent=11 // pred_fallthru
          _
        // Predicated region
        $region33: #{tpu_custom_call.1} parent=11 // pred_check
          %p224 = pneg %p168
        $region34: #{tpu_custom_call.1} parent=11 // pred_check_branch
          %226 = sbr.rel (%p224) target = $region36
        $region35: #{tpu_custom_call.1} parent=11 // pred_region
          _
        $region36: #{tpu_custom_call.1} parent=11 // pred_fallthru
          _
      $region12: #{tpu_custom_call.1} parent=5 // pred_fallthru
        _
      %p227 = scmp.lt.s32.totalorder %s16, 2
      // Predicated region
      $region37: #{tpu_custom_call.1} parent=5 // pred_check
        %p228 = pneg %p227
      $region38: #{tpu_custom_call.1} parent=5 // pred_check_branch
        %230 = sbr.rel (%p228) target = $region40
      $region39: #{tpu_custom_call.1} parent=5 // pred_region
        // Predicated region
        $region41: #{tpu_custom_call.1} parent=39 // pred_check
          %p231 = pneg %p36
        $region42: #{tpu_custom_call.1} parent=39 // pred_check_branch
          %233 = sbr.rel (%p231) target = $region44
        $region43: #{tpu_custom_call.1} parent=39 // pred_region
          %s234 = smul.u32 16, %s16
          %p235 = scmp.lt.s32.totalorder %s234, 31
          %s236 = scalar_select %p235, %s234, 31
          %s237 = smul.addr %s236, 8
          %s238 = scalar_lea.vmem %s0, %s237
          %s239 = smul.u32 16, %s16
        $region44: #{tpu_custom_call.1} parent=39 // pred_fallthru
          _
      $region40: #{tpu_custom_call.1} parent=5 // pred_fallthru
        _
      %p240 = scmp.le.s32.totalorder 1, %s16
      %p241 = scmp.lt.s32.totalorder %s16, 3
      %p242 = pnand %p240, %p241
      %p243 = pneg %p242
      // Predicated region
      $region45: #{tpu_custom_call.1} parent=5 // pred_check
        _
      $region46: #{tpu_custom_call.1} parent=5 // pred_check_branch
        %245 = sbr.rel (%p242) target = $region48
      $region47: #{tpu_custom_call.1} parent=5 // pred_region
        %s246 = ssub.s32 %s16, 1
        %s247 = smul.u32 16, %s21
        %p248 = scmp.lt.s32.totalorder %s247, 31
        %s249 = scalar_select %p248, %s247, 31
        %s250 = smul.addr %s249, 8
        %s251 = scalar_lea.vmem %s0, %s250
        %p252 = pneg %p42
        %p253 = pneg %p39
        %p254 = pneg %p63
        %p255 = pneg %p60
        %p256 = pneg %p84
        %p257 = pneg %p81
        %p258 = pneg %p105
        %p259 = pneg %p102
        %p260 = pneg %p126
        %p261 = pneg %p123
        %p262 = pneg %p147
        %p263 = pneg %p144
        %p264 = pneg %p168
        %p265 = pneg %p165
        %p266 = pneg %p194
        %p267 = pneg %p191
        %s268 = sand.u32 %s181, 1
        %s269 = scalar_lea.sflag [#allocation3], %s268
        %s270 = sand.u32 %s181, 1
        %s271 = smul.addr %s270, 128
        %s272 = scalar_lea.vmem [#allocation2], %s271
        %s273 = smul.u32 16, %s21
        %p274 = scmp.lt.s32.totalorder %s273, 31
        %s275 = scalar_select %p274, %s273, 31
        %s276 = smul.addr %s275, 8
        %s277 = scalar_lea.vmem %s0, %s276
        %s278 = smul.u32 16, %s21
        %s279 = smul.u32 16, %s21
        %v280 = vld [vmem:[%s277] sm:$0xff]
        %v281 = vld [vmem:[%s277 + $0x8] sm:$0xff]
        %v282 = vld [vmem:[%s277 + $0x10] sm:$0xff]
        %v283 = vld [vmem:[%s277 + $0x18] sm:$0xff]
        %v284 = vld [vmem:[%s277 + $0x20] sm:$0xff]
        %v285 = vld [vmem:[%s277 + $0x28] sm:$0xff]
        %v286 = vld [vmem:[%s277 + $0x30] sm:$0xff]
        %v287 = vld [vmem:[%s277 + $0x38] sm:$0xff]
        %v288 = vld [vmem:[%s277 + $0x40] sm:$0xff]
        %v289 = vld [vmem:[%s277 + $0x48] sm:$0xff]
        %v290 = vld [vmem:[%s277 + $0x50] sm:$0xff]
        %v291 = vld [vmem:[%s277 + $0x58] sm:$0xff]
        %v292 = vld [vmem:[%s277 + $0x60] sm:$0xff]
        %v293 = vld [vmem:[%s277 + $0x68] sm:$0xff]
        %v294 = vld [vmem:[%s277 + $0x70] sm:$0xff]
        %v295 = vld [vmem:[%s277 + $0x78] sm:$0xff]
        %v296 = vld [vmem:[%s1] sm:$0xff]
        %v297 = vld [vmem:[%s1 + $0x8] sm:$0xff]
        %v298 = vld [vmem:[%s1 + $0x10] sm:$0xff]
        %v299 = vld [vmem:[%s1 + $0x18] sm:$0xff]
        %v300 = vld [vmem:[%s1 + $0x20] sm:$0xff]
        %v301 = vld [vmem:[%s1 + $0x28] sm:$0xff]
        %v302 = vld [vmem:[%s1 + $0x30] sm:$0xff]
        %v303 = vld [vmem:[%s1 + $0x38] sm:$0xff]
        %v304 = vld [vmem:[%s2] sm:$0x1]
        %v306 = vlaneseq
        %v307 = vshrl.u32 %v306, 7
        %v308 = vsub.s32 0, %v307
        %v309 = vrot.slane %v304, %v308
        %vm311 = vcmask 523264
        %v313 = vsel %vm311, %v280, 0
        %v316 = vsel %vm311, %v281, 0
        %v319 = vsel %vm311, %v282, 0
        %v322 = vsel %vm311, %v283, 0
        %v325 = vsel %vm311, %v284, 0
        %v328 = vsel %vm311, %v285, 0
        %v331 = vsel %vm311, %v286, 0
        %v334 = vsel %vm311, %v287, 0
        %v337 = vsel %vm311, %v288, 0
        %v340 = vsel %vm311, %v289, 0
        %v343 = vsel %vm311, %v290, 0
        %v346 = vsel %vm311, %v291, 0
        %v349 = vsel %vm311, %v292, 0
        %v352 = vsel %vm311, %v293, 0
        %v355 = vsel %vm311, %v294, 0
        %v358 = vsel %vm311, %v295, 0
        %360 = vmatprep.subr.mxu0 0.0
        %361 = vmatpush1.msra.mxu0 0.0
        %362 = vmatprep.subr.mxu0 0.0
        %363 = vmatpush1.msra.mxu0 0.0
        %364 = vmatprep.subr.mxu0 0.0
        %365 = vmatpush1.msra.mxu0 0.0
        %366 = vmatprep.subr.mxu0 0.0
        %367 = vmatpush1.msra.mxu0 0.0
        %368 = vmatprep.subr.mxu0 0.0
        %369 = vmatpush1.msra.mxu0 0.0
        %370 = vmatprep.subr.mxu0 0.0
        %371 = vmatpush1.msra.mxu0 0.0
        %372 = vmatprep.subr.mxu0 0.0
        %373 = vmatpush1.msra.mxu0 0.0
        %374 = vmatprep.subr.mxu0 0.0
        %375 = vmatpush1.msra.mxu0 0.0
        %376 = vmatprep.subr.mxu0 0.0
        %377 = vmatpush1.msra.mxu0 %v303
        %378 = vmatprep.subr.mxu0 0.0
        %379 = vmatpush1.msra.mxu0 %v302
        %380 = vmatprep.subr.mxu0 0.0
        %381 = vmatpush1.msra.mxu0 %v301
        %382 = vmatprep.subr.mxu0 0.0
        %383 = vmatpush1.msra.mxu0 %v300
        %384 = vmatprep.subr.mxu0 0.0
        %385 = vmatpush1.msra.mxu0 %v299
        %386 = vmatprep.subr.mxu0 0.0
        %387 = vmatpush1.msra.mxu0 %v298
        %388 = vmatprep.subr.mxu0 0.0
        %389 = vmatpush1.msra.mxu0 %v297
        %390 = vmatprep.subr.mxu0 0.0
        %391 = vmatpush1.msra.mxu0 %v296
        %392 = vmatprep.subr.mxu0 0.0
        %393 = vmatpush2.msra.mxu0 0.0
        %394 = vmatprep.subr.mxu0 0.0
        %395 = vmatpush2.msra.mxu0 0.0
        %396 = vmatprep.subr.mxu0 0.0
        %397 = vmatpush2.msra.mxu0 0.0
        %398 = vmatprep.subr.mxu0 0.0
        %399 = vmatpush2.msra.mxu0 0.0
        %400 = vmatprep.subr.mxu0 0.0
        %401 = vmatpush2.msra.mxu0 0.0
        %402 = vmatprep.subr.mxu0 0.0
        %403 = vmatpush2.msra.mxu0 0.0
        %404 = vmatprep.subr.mxu0 0.0
        %405 = vmatpush2.msra.mxu0 0.0
        %406 = vmatprep.subr.mxu0 0.0
        %407 = vmatpush2.msra.mxu0 0.0
        %408 = vmatprep.subr.mxu0 0.0
        %409 = vmatpush2.msra.mxu0 0.0
        %410 = vmatprep.subr.mxu0 0.0
        %411 = vmatpush2.msra.mxu0 0.0
        %412 = vmatprep.subr.mxu0 0.0
        %413 = vmatpush2.msra.mxu0 0.0
        %414 = vmatprep.subr.mxu0 0.0
        %415 = vmatpush2.msra.mxu0 0.0
        %416 = vmatprep.subr.mxu0 0.0
        %417 = vmatpush2.msra.mxu0 0.0
        %418 = vmatprep.subr.mxu0 0.0
        %419 = vmatpush2.msra.mxu0 0.0
        %420 = vmatprep.subr.mxu0 0.0
        %421 = vmatpush2.msra.mxu0 0.0
        %422 = vmatprep.subr.mxu0 0.0
        %423 = vmatpush2.msra.mxu0 0.0
        %424 = vmatprep.mubr.f32.mxu0 0.0
        %425 = vmatmul.mubr.f32.gmra.mxu0 %v313
        %v426 = vpop.f32.mrf.mxu0
        %v427 = vadd.f32 %v309, %v426
        %v428 = vpop.f32.mrf.mxu0
        %429 = vmatprep.mubr.f32.mxu0 0.0
        %430 = vmatmul.mubr.f32.gmra.mxu0 %v316
        %v431 = vpop.f32.mrf.mxu0
        %v432 = vadd.f32 %v309, %v431
        %v433 = vpop.f32.mrf.mxu0
        %434 = vmatprep.mubr.f32.mxu0 0.0
        %435 = vmatmul.mubr.f32.gmra.mxu0 %v319
        %v436 = vpop.f32.mrf.mxu0
        %v437 = vadd.f32 %v309, %v436
        %v438 = vpop.f32.mrf.mxu0
        %439 = vmatprep.mubr.f32.mxu0 0.0
        %440 = vmatmul.mubr.f32.gmra.mxu0 %v322
        %v441 = vpop.f32.mrf.mxu0
        %v442 = vadd.f32 %v309, %v441
        %v443 = vpop.f32.mrf.mxu0
        %444 = vmatprep.mubr.f32.mxu0 0.0
        %445 = vmatmul.mubr.f32.gmra.mxu0 %v325
        %v446 = vpop.f32.mrf.mxu0
        %v447 = vadd.f32 %v309, %v446
        %v448 = vpop.f32.mrf.mxu0
        %449 = vmatprep.mubr.f32.mxu0 0.0
        %450 = vmatmul.mubr.f32.gmra.mxu0 %v328
        %v451 = vpop.f32.mrf.mxu0
        %v452 = vadd.f32 %v309, %v451
        %v453 = vpop.f32.mrf.mxu0
        %454 = vmatprep.mubr.f32.mxu0 0.0
        %455 = vmatmul.mubr.f32.gmra.mxu0 %v331
        %v456 = vpop.f32.mrf.mxu0
        %v457 = vadd.f32 %v309, %v456
        %v458 = vpop.f32.mrf.mxu0
        %459 = vmatprep.mubr.f32.mxu0 0.0
        %460 = vmatmul.mubr.f32.gmra.mxu0 %v334
        %v461 = vpop.f32.mrf.mxu0
        %v462 = vadd.f32 %v309, %v461
        %v463 = vpop.f32.mrf.mxu0
        %464 = vmatprep.mubr.f32.mxu0 0.0
        %465 = vmatmul.mubr.f32.gmra.mxu0 %v337
        %v466 = vpop.f32.mrf.mxu0
        %v467 = vadd.f32 %v309, %v466
        %v468 = vpop.f32.mrf.mxu0
        %469 = vmatprep.mubr.f32.mxu0 0.0
        %470 = vmatmul.mubr.f32.gmra.mxu0 %v340
        %v471 = vpop.f32.mrf.mxu0
        %v472 = vadd.f32 %v309, %v471
        %v473 = vpop.f32.mrf.mxu0
        %474 = vmatprep.mubr.f32.mxu0 0.0
        %475 = vmatmul.mubr.f32.gmra.mxu0 %v343
        %v476 = vpop.f32.mrf.mxu0
        %v477 = vadd.f32 %v309, %v476
        %v478 = vpop.f32.mrf.mxu0
        %479 = vmatprep.mubr.f32.mxu0 0.0
        %480 = vmatmul.mubr.f32.gmra.mxu0 %v346
        %v481 = vpop.f32.mrf.mxu0
        %v482 = vadd.f32 %v309, %v481
        %v483 = vpop.f32.mrf.mxu0
        %484 = vmatprep.mubr.f32.mxu0 0.0
        %485 = vmatmul.mubr.f32.gmra.mxu0 %v349
        %v486 = vpop.f32.mrf.mxu0
        %v487 = vadd.f32 %v309, %v486
        %v488 = vpop.f32.mrf.mxu0
        %489 = vmatprep.mubr.f32.mxu0 0.0
        %490 = vmatmul.mubr.f32.gmra.mxu0 %v352
        %v491 = vpop.f32.mrf.mxu0
        %v492 = vadd.f32 %v309, %v491
        %v493 = vpop.f32.mrf.mxu0
        %494 = vmatprep.mubr.f32.mxu0 0.0
        %495 = vmatmul.mubr.f32.gmra.mxu0 %v355
        %v496 = vpop.f32.mrf.mxu0
        %v497 = vadd.f32 %v309, %v496
        %v498 = vpop.f32.mrf.mxu0
        %499 = vmatprep.mubr.f32.mxu0 0.0
        %500 = vmatmul.mubr.f32.gmra.mxu0 %v358
        %v501 = vpop.f32.mrf.mxu0
        %v502 = vadd.f32 %v309, %v501
        %v503 = vpop.f32.mrf.mxu0
        %504 = vdwg.mxu0
        %v505 = vmul.f32 %v427, 0.01
        %v506 = vmul.f32 %v432, 0.01
        %v507 = vmul.f32 %v437, 0.01
        %v508 = vmul.f32 %v442, 0.01
        %v509 = vmul.f32 %v447, 0.01
        %v510 = vmul.f32 %v452, 0.01
        %v511 = vmul.f32 %v457, 0.01
        %v512 = vmul.f32 %v462, 0.01
        %v513 = vmul.f32 %v467, 0.01
        %v514 = vmul.f32 %v472, 0.01
        %v515 = vmul.f32 %v477, 0.01
        %v516 = vmul.f32 %v482, 0.01
        %v517 = vmul.f32 %v487, 0.01
        %v518 = vmul.f32 %v492, 0.01
        %v519 = vmul.f32 %v497, 0.01
        %v520 = vmul.f32 %v502, 0.01
        %v521 = vmax.f32 %v427, %v505
        %v522 = vmax.f32 %v432, %v506
        %v523 = vmax.f32 %v437, %v507
        %v524 = vmax.f32 %v442, %v508
        %v525 = vmax.f32 %v447, %v509
        %v526 = vmax.f32 %v452, %v510
        %v527 = vmax.f32 %v457, %v511
        %v528 = vmax.f32 %v462, %v512
        %v529 = vmax.f32 %v467, %v513
        %v530 = vmax.f32 %v472, %v514
        %v531 = vmax.f32 %v477, %v515
        %v532 = vmax.f32 %v482, %v516
        %v533 = vmax.f32 %v487, %v517
        %v534 = vmax.f32 %v492, %v518
        %v535 = vmax.f32 %v497, %v519
        %v536 = vmax.f32 %v502, %v520
        %v537 = vld [vmem:[%s3] sm:$0xff]
        %v538 = vld [vmem:[%s3 + $0x8] sm:$0xff]
        %v539 = vld [vmem:[%s3 + $0x10] sm:$0xff]
        %v540 = vld [vmem:[%s3 + $0x18] sm:$0xff]
        %v541 = vld [vmem:[%s3 + $0x20] sm:$0xff]
        %v542 = vld [vmem:[%s3 + $0x28] sm:$0xff]
        %v543 = vld [vmem:[%s3 + $0x30] sm:$0xff]
        %v544 = vld [vmem:[%s3 + $0x38] sm:$0xff]
        %v545 = vld [vmem:[%s3 + $0x40] sm:$0xff]
        %v546 = vld [vmem:[%s3 + $0x48] sm:$0xff]
        %v547 = vld [vmem:[%s3 + $0x50] sm:$0xff]
        %v548 = vld [vmem:[%s3 + $0x58] sm:$0xff]
        %v549 = vld [vmem:[%s3 + $0x60] sm:$0xff]
        %v550 = vld [vmem:[%s3 + $0x68] sm:$0xff]
        %v551 = vld [vmem:[%s3 + $0x70] sm:$0xff]
        %v552 = vld [vmem:[%s3 + $0x78] sm:$0xff]
        %v553 = vld [vmem:[%s4] sm:$0x1]
        %v555 = vlaneseq
        %v556 = vshrl.u32 %v555, 7
        %v557 = vsub.s32 0, %v556
        %v558 = vrot.slane %v553, %v557
        %560 = vmatprep.subr.mxu0 0.0
        %561 = vmatpush1.msra.mxu0 %v552
        %562 = vmatprep.subr.mxu0 0.0
        %563 = vmatpush1.msra.mxu0 %v551
        %564 = vmatprep.subr.mxu0 0.0
        %565 = vmatpush1.msra.mxu0 %v550
        %566 = vmatprep.subr.mxu0 0.0
        %567 = vmatpush1.msra.mxu0 %v549
        %568 = vmatprep.subr.mxu0 0.0
        %569 = vmatpush1.msra.mxu0 %v548
        %570 = vmatprep.subr.mxu0 0.0
        %571 = vmatpush1.msra.mxu0 %v547
        %572 = vmatprep.subr.mxu0 0.0
        %573 = vmatpush1.msra.mxu0 %v546
        %574 = vmatprep.subr.mxu0 0.0
        %575 = vmatpush1.msra.mxu0 %v545
        %576 = vmatprep.subr.mxu0 0.0
        %577 = vmatpush1.msra.mxu0 %v544
        %578 = vmatprep.subr.mxu0 0.0
        %579 = vmatpush1.msra.mxu0 %v543
        %580 = vmatprep.subr.mxu0 0.0
        %581 = vmatpush1.msra.mxu0 %v542
        %582 = vmatprep.subr.mxu0 0.0
        %583 = vmatpush1.msra.mxu0 %v541
        %584 = vmatprep.subr.mxu0 0.0
        %585 = vmatpush1.msra.mxu0 %v540
        %586 = vmatprep.subr.mxu0 0.0
        %587 = vmatpush1.msra.mxu0 %v539
        %588 = vmatprep.subr.mxu0 0.0
        %589 = vmatpush1.msra.mxu0 %v538
        %590 = vmatprep.subr.mxu0 0.0
        %591 = vmatpush1.msra.mxu0 %v537
        %592 = vmatprep.subr.mxu0 0.0
        %593 = vmatpush2.msra.mxu0 0.0
        %594 = vmatprep.subr.mxu0 0.0
        %595 = vmatpush2.msra.mxu0 0.0
        %596 = vmatprep.subr.mxu0 0.0
        %597 = vmatpush2.msra.mxu0 0.0
        %598 = vmatprep.subr.mxu0 0.0
        %599 = vmatpush2.msra.mxu0 0.0
        %600 = vmatprep.subr.mxu0 0.0
        %601 = vmatpush2.msra.mxu0 0.0
        %602 = vmatprep.subr.mxu0 0.0
        %603 = vmatpush2.msra.mxu0 0.0
        %604 = vmatprep.subr.mxu0 0.0
        %605 = vmatpush2.msra.mxu0 0.0
        %606 = vmatprep.subr.mxu0 0.0
        %607 = vmatpush2.msra.mxu0 0.0
        %608 = vmatprep.subr.mxu0 0.0
        %609 = vmatpush2.msra.mxu0 0.0
        %610 = vmatprep.subr.mxu0 0.0
        %611 = vmatpush2.msra.mxu0 0.0
        %612 = vmatprep.subr.mxu0 0.0
        %613 = vmatpush2.msra.mxu0 0.0
        %614 = vmatprep.subr.mxu0 0.0
        %615 = vmatpush2.msra.mxu0 0.0
        %616 = vmatprep.subr.mxu0 0.0
        %617 = vmatpush2.msra.mxu0 0.0
        %618 = vmatprep.subr.mxu0 0.0
        %619 = vmatpush2.msra.mxu0 0.0
        %620 = vmatprep.subr.mxu0 0.0
        %621 = vmatpush2.msra.mxu0 0.0
        %622 = vmatprep.subr.mxu0 0.0
        %623 = vmatpush2.msra.mxu0 0.0
        %624 = vmatprep.mubr.f32.mxu0 0.0
        %625 = vmatmul.mubr.f32.gmra.mxu0 %v521
        %v626 = vpop.f32.mrf.mxu0
        %v627 = vadd.f32 %v558, %v626
        %v628 = vpop.f32.mrf.mxu0
        %629 = vmatprep.mubr.f32.mxu0 0.0
        %630 = vmatmul.mubr.f32.gmra.mxu0 %v522
        %v631 = vpop.f32.mrf.mxu0
        %v632 = vadd.f32 %v558, %v631
        %v633 = vpop.f32.mrf.mxu0
        %634 = vmatprep.mubr.f32.mxu0 0.0
        %635 = vmatmul.mubr.f32.gmra.mxu0 %v523
        %v636 = vpop.f32.mrf.mxu0
        %v637 = vadd.f32 %v558, %v636
        %v638 = vpop.f32.mrf.mxu0
        %639 = vmatprep.mubr.f32.mxu0 0.0
        %640 = vmatmul.mubr.f32.gmra.mxu0 %v524
        %v641 = vpop.f32.mrf.mxu0
        %v642 = vadd.f32 %v558, %v641
        %v643 = vpop.f32.mrf.mxu0
        %644 = vmatprep.mubr.f32.mxu0 0.0
        %645 = vmatmul.mubr.f32.gmra.mxu0 %v525
        %v646 = vpop.f32.mrf.mxu0
        %v647 = vadd.f32 %v558, %v646
        %v648 = vpop.f32.mrf.mxu0
        %649 = vmatprep.mubr.f32.mxu0 0.0
        %650 = vmatmul.mubr.f32.gmra.mxu0 %v526
        %v651 = vpop.f32.mrf.mxu0
        %v652 = vadd.f32 %v558, %v651
        %v653 = vpop.f32.mrf.mxu0
        %654 = vmatprep.mubr.f32.mxu0 0.0
        %655 = vmatmul.mubr.f32.gmra.mxu0 %v527
        %v656 = vpop.f32.mrf.mxu0
        %v657 = vadd.f32 %v558, %v656
        %v658 = vpop.f32.mrf.mxu0
        %659 = vmatprep.mubr.f32.mxu0 0.0
        %660 = vmatmul.mubr.f32.gmra.mxu0 %v528
        %v661 = vpop.f32.mrf.mxu0
        %v662 = vadd.f32 %v558, %v661
        %v663 = vpop.f32.mrf.mxu0
        %664 = vmatprep.mubr.f32.mxu0 0.0
        %665 = vmatmul.mubr.f32.gmra.mxu0 %v529
        %v666 = vpop.f32.mrf.mxu0
        %v667 = vadd.f32 %v558, %v666
        %v668 = vpop.f32.mrf.mxu0
        %669 = vmatprep.mubr.f32.mxu0 0.0
        %670 = vmatmul.mubr.f32.gmra.mxu0 %v530
        %v671 = vpop.f32.mrf.mxu0
        %v672 = vadd.f32 %v558, %v671
        %v673 = vpop.f32.mrf.mxu0
        %674 = vmatprep.mubr.f32.mxu0 0.0
        %675 = vmatmul.mubr.f32.gmra.mxu0 %v531
        %v676 = vpop.f32.mrf.mxu0
        %v677 = vadd.f32 %v558, %v676
        %v678 = vpop.f32.mrf.mxu0
        %679 = vmatprep.mubr.f32.mxu0 0.0
        %680 = vmatmul.mubr.f32.gmra.mxu0 %v532
        %v681 = vpop.f32.mrf.mxu0
        %v682 = vadd.f32 %v558, %v681
        %v683 = vpop.f32.mrf.mxu0
        %684 = vmatprep.mubr.f32.mxu0 0.0
        %685 = vmatmul.mubr.f32.gmra.mxu0 %v533
        %v686 = vpop.f32.mrf.mxu0
        %v687 = vadd.f32 %v558, %v686
        %v688 = vpop.f32.mrf.mxu0
        %689 = vmatprep.mubr.f32.mxu0 0.0
        %690 = vmatmul.mubr.f32.gmra.mxu0 %v534
        %v691 = vpop.f32.mrf.mxu0
        %v692 = vadd.f32 %v558, %v691
        %v693 = vpop.f32.mrf.mxu0
        %694 = vmatprep.mubr.f32.mxu0 0.0
        %695 = vmatmul.mubr.f32.gmra.mxu0 %v535
        %v696 = vpop.f32.mrf.mxu0
        %v697 = vadd.f32 %v558, %v696
        %v698 = vpop.f32.mrf.mxu0
        %699 = vmatprep.mubr.f32.mxu0 0.0
        %700 = vmatmul.mubr.f32.gmra.mxu0 %v536
        %v701 = vpop.f32.mrf.mxu0
        %v702 = vadd.f32 %v558, %v701
        %v703 = vpop.f32.mrf.mxu0
        %704 = vdwg.mxu0
        %v705 = vmul.f32 %v627, 0.01
        %v706 = vmul.f32 %v632, 0.01
        %v707 = vmul.f32 %v637, 0.01
        %v708 = vmul.f32 %v642, 0.01
        %v709 = vmul.f32 %v647, 0.01
        %v710 = vmul.f32 %v652, 0.01
        %v711 = vmul.f32 %v657, 0.01
        %v712 = vmul.f32 %v662, 0.01
        %v713 = vmul.f32 %v667, 0.01
        %v714 = vmul.f32 %v672, 0.01
        %v715 = vmul.f32 %v677, 0.01
        %v716 = vmul.f32 %v682, 0.01
        %v717 = vmul.f32 %v687, 0.01
        %v718 = vmul.f32 %v692, 0.01
        %v719 = vmul.f32 %v697, 0.01
        %v720 = vmul.f32 %v702, 0.01
        %v721 = vmax.f32 %v627, %v705
        %v722 = vmax.f32 %v632, %v706
        %v723 = vmax.f32 %v637, %v707
        %v724 = vmax.f32 %v642, %v708
        %v725 = vmax.f32 %v647, %v709
        %v726 = vmax.f32 %v652, %v710
        %v727 = vmax.f32 %v657, %v711
        %v728 = vmax.f32 %v662, %v712
        %v729 = vmax.f32 %v667, %v713
        %v730 = vmax.f32 %v672, %v714
        %v731 = vmax.f32 %v677, %v715
        %v732 = vmax.f32 %v682, %v716
        %v733 = vmax.f32 %v687, %v717
        %v734 = vmax.f32 %v692, %v718
        %v735 = vmax.f32 %v697, %v719
        %v736 = vmax.f32 %v702, %v720
        %v737 = vld [vmem:[%s5] sm:$0xff]
        %v738 = vld [vmem:[%s5 + $0x8] sm:$0xff]
        %v739 = vld [vmem:[%s5 + $0x10] sm:$0xff]
        %v740 = vld [vmem:[%s5 + $0x18] sm:$0xff]
        %v741 = vld [vmem:[%s5 + $0x20] sm:$0xff]
        %v742 = vld [vmem:[%s5 + $0x28] sm:$0xff]
        %v743 = vld [vmem:[%s5 + $0x30] sm:$0xff]
        %v744 = vld [vmem:[%s5 + $0x38] sm:$0xff]
        %v745 = vld [vmem:[%s5 + $0x40] sm:$0xff]
        %v746 = vld [vmem:[%s5 + $0x48] sm:$0xff]
        %v747 = vld [vmem:[%s5 + $0x50] sm:$0xff]
        %v748 = vld [vmem:[%s5 + $0x58] sm:$0xff]
        %v749 = vld [vmem:[%s5 + $0x60] sm:$0xff]
        %v750 = vld [vmem:[%s5 + $0x68] sm:$0xff]
        %v751 = vld [vmem:[%s5 + $0x70] sm:$0xff]
        %v752 = vld [vmem:[%s5 + $0x78] sm:$0xff]
        %v753 = vld [vmem:[%s6] sm:$0x1]
        %v755 = vlaneseq
        %v756 = vshrl.u32 %v755, 7
        %v757 = vsub.s32 0, %v756
        %v758 = vrot.slane %v753, %v757
        %760 = vmatprep.subr.mxu0 0.0
        %761 = vmatpush1.msra.mxu0 %v752
        %762 = vmatprep.subr.mxu0 0.0
        %763 = vmatpush1.msra.mxu0 %v751
        %764 = vmatprep.subr.mxu0 0.0
        %765 = vmatpush1.msra.mxu0 %v750
        %766 = vmatprep.subr.mxu0 0.0
        %767 = vmatpush1.msra.mxu0 %v749
        %768 = vmatprep.subr.mxu0 0.0
        %769 = vmatpush1.msra.mxu0 %v748
        %770 = vmatprep.subr.mxu0 0.0
        %771 = vmatpush1.msra.mxu0 %v747
        %772 = vmatprep.subr.mxu0 0.0
        %773 = vmatpush1.msra.mxu0 %v746
        %774 = vmatprep.subr.mxu0 0.0
        %775 = vmatpush1.msra.mxu0 %v745
        %776 = vmatprep.subr.mxu0 0.0
        %777 = vmatpush1.msra.mxu0 %v744
        %778 = vmatprep.subr.mxu0 0.0
        %779 = vmatpush1.msra.mxu0 %v743
        %780 = vmatprep.subr.mxu0 0.0
        %781 = vmatpush1.msra.mxu0 %v742
        %782 = vmatprep.subr.mxu0 0.0
        %783 = vmatpush1.msra.mxu0 %v741
        %784 = vmatprep.subr.mxu0 0.0
        %785 = vmatpush1.msra.mxu0 %v740
        %786 = vmatprep.subr.mxu0 0.0
        %787 = vmatpush1.msra.mxu0 %v739
        %788 = vmatprep.subr.mxu0 0.0
        %789 = vmatpush1.msra.mxu0 %v738
        %790 = vmatprep.subr.mxu0 0.0
        %791 = vmatpush1.msra.mxu0 %v737
        %792 = vmatprep.subr.mxu0 0.0
        %793 = vmatpush2.msra.mxu0 0.0
        %794 = vmatprep.subr.mxu0 0.0
        %795 = vmatpush2.msra.mxu0 0.0
        %796 = vmatprep.subr.mxu0 0.0
        %797 = vmatpush2.msra.mxu0 0.0
        %798 = vmatprep.subr.mxu0 0.0
        %799 = vmatpush2.msra.mxu0 0.0
        %800 = vmatprep.subr.mxu0 0.0
        %801 = vmatpush2.msra.mxu0 0.0
        %802 = vmatprep.subr.mxu0 0.0
        %803 = vmatpush2.msra.mxu0 0.0
        %804 = vmatprep.subr.mxu0 0.0
        %805 = vmatpush2.msra.mxu0 0.0
        %806 = vmatprep.subr.mxu0 0.0
        %807 = vmatpush2.msra.mxu0 0.0
        %808 = vmatprep.subr.mxu0 0.0
        %809 = vmatpush2.msra.mxu0 0.0
        %810 = vmatprep.subr.mxu0 0.0
        %811 = vmatpush2.msra.mxu0 0.0
        %812 = vmatprep.subr.mxu0 0.0
        %813 = vmatpush2.msra.mxu0 0.0
        %814 = vmatprep.subr.mxu0 0.0
        %815 = vmatpush2.msra.mxu0 0.0
        %816 = vmatprep.subr.mxu0 0.0
        %817 = vmatpush2.msra.mxu0 0.0
        %818 = vmatprep.subr.mxu0 0.0
        %819 = vmatpush2.msra.mxu0 0.0
        %820 = vmatprep.subr.mxu0 0.0
        %821 = vmatpush2.msra.mxu0 0.0
        %822 = vmatprep.subr.mxu0 0.0
        %823 = vmatpush2.msra.mxu0 0.0
        %824 = vmatprep.mubr.f32.mxu0 0.0
        %825 = vmatmul.mubr.f32.gmra.mxu0 %v721
        %v826 = vpop.f32.mrf.mxu0
        %v827 = vadd.f32 %v758, %v826
        %v828 = vpop.f32.mrf.mxu0
        %829 = vmatprep.mubr.f32.mxu0 0.0
        %830 = vmatmul.mubr.f32.gmra.mxu0 %v722
        %v831 = vpop.f32.mrf.mxu0
        %v832 = vadd.f32 %v758, %v831
        %v833 = vpop.f32.mrf.mxu0
        %834 = vmatprep.mubr.f32.mxu0 0.0
        %835 = vmatmul.mubr.f32.gmra.mxu0 %v723
        %v836 = vpop.f32.mrf.mxu0
        %v837 = vadd.f32 %v758, %v836
        %v838 = vpop.f32.mrf.mxu0
        %839 = vmatprep.mubr.f32.mxu0 0.0
        %840 = vmatmul.mubr.f32.gmra.mxu0 %v724
        %v841 = vpop.f32.mrf.mxu0
        %v842 = vadd.f32 %v758, %v841
        %v843 = vpop.f32.mrf.mxu0
        %844 = vmatprep.mubr.f32.mxu0 0.0
        %845 = vmatmul.mubr.f32.gmra.mxu0 %v725
        %v846 = vpop.f32.mrf.mxu0
        %v847 = vadd.f32 %v758, %v846
        %v848 = vpop.f32.mrf.mxu0
        %849 = vmatprep.mubr.f32.mxu0 0.0
        %850 = vmatmul.mubr.f32.gmra.mxu0 %v726
        %v851 = vpop.f32.mrf.mxu0
        %v852 = vadd.f32 %v758, %v851
        %v853 = vpop.f32.mrf.mxu0
        %854 = vmatprep.mubr.f32.mxu0 0.0
        %855 = vmatmul.mubr.f32.gmra.mxu0 %v727
        %v856 = vpop.f32.mrf.mxu0
        %v857 = vadd.f32 %v758, %v856
        %v858 = vpop.f32.mrf.mxu0
        %859 = vmatprep.mubr.f32.mxu0 0.0
        %860 = vmatmul.mubr.f32.gmra.mxu0 %v728
        %v861 = vpop.f32.mrf.mxu0
        %v862 = vadd.f32 %v758, %v861
        %v863 = vpop.f32.mrf.mxu0
        %864 = vmatprep.mubr.f32.mxu0 0.0
        %865 = vmatmul.mubr.f32.gmra.mxu0 %v729
        %v866 = vpop.f32.mrf.mxu0
        %v867 = vadd.f32 %v758, %v866
        %v868 = vpop.f32.mrf.mxu0
        %869 = vmatprep.mubr.f32.mxu0 0.0
        %870 = vmatmul.mubr.f32.gmra.mxu0 %v730
        %v871 = vpop.f32.mrf.mxu0
        %v872 = vadd.f32 %v758, %v871
        %v873 = vpop.f32.mrf.mxu0
        %874 = vmatprep.mubr.f32.mxu0 0.0
        %875 = vmatmul.mubr.f32.gmra.mxu0 %v731
        %v876 = vpop.f32.mrf.mxu0
        %v877 = vadd.f32 %v758, %v876
        %v878 = vpop.f32.mrf.mxu0
        %879 = vmatprep.mubr.f32.mxu0 0.0
        %880 = vmatmul.mubr.f32.gmra.mxu0 %v732
        %v881 = vpop.f32.mrf.mxu0
        %v882 = vadd.f32 %v758, %v881
        %v883 = vpop.f32.mrf.mxu0
        %884 = vmatprep.mubr.f32.mxu0 0.0
        %885 = vmatmul.mubr.f32.gmra.mxu0 %v733
        %v886 = vpop.f32.mrf.mxu0
        %v887 = vadd.f32 %v758, %v886
        %v888 = vpop.f32.mrf.mxu0
        %889 = vmatprep.mubr.f32.mxu0 0.0
        %890 = vmatmul.mubr.f32.gmra.mxu0 %v734
        %v891 = vpop.f32.mrf.mxu0
        %v892 = vadd.f32 %v758, %v891
        %v893 = vpop.f32.mrf.mxu0
        %894 = vmatprep.mubr.f32.mxu0 0.0
        %895 = vmatmul.mubr.f32.gmra.mxu0 %v735
        %v896 = vpop.f32.mrf.mxu0
        %v897 = vadd.f32 %v758, %v896
        %v898 = vpop.f32.mrf.mxu0
        %899 = vmatprep.mubr.f32.mxu0 0.0
        %900 = vmatmul.mubr.f32.gmra.mxu0 %v736
        %v901 = vpop.f32.mrf.mxu0
        %v902 = vadd.f32 %v758, %v901
        %v903 = vpop.f32.mrf.mxu0
        %904 = vdwg.mxu0
        %v905 = vtanh.pop %v827
        %v906 = vtanh.pop %v832
        %v907 = vtanh.pop %v837
        %v908 = vtanh.pop %v842
        %v909 = vtanh.pop %v847
        %v910 = vtanh.pop %v852
        %v911 = vtanh.pop %v857
        %v912 = vtanh.pop %v862
        %v913 = vtanh.pop %v867
        %v914 = vtanh.pop %v872
        %v915 = vtanh.pop %v877
        %v916 = vtanh.pop %v882
        %v917 = vtanh.pop %v887
        %v918 = vtanh.pop %v892
        %v919 = vtanh.pop %v897
        %v920 = vtanh.pop %v902
        %921 = vst [vmem:[%s272] sm:$0xff] %v905
        %922 = vst [vmem:[%s272 + $0x8] sm:$0xff] %v906
        %923 = vst [vmem:[%s272 + $0x10] sm:$0xff] %v907
        %924 = vst [vmem:[%s272 + $0x18] sm:$0xff] %v908
        %925 = vst [vmem:[%s272 + $0x20] sm:$0xff] %v909
        %926 = vst [vmem:[%s272 + $0x28] sm:$0xff] %v910
        %927 = vst [vmem:[%s272 + $0x30] sm:$0xff] %v911
        %928 = vst [vmem:[%s272 + $0x38] sm:$0xff] %v912
        %929 = vst [vmem:[%s272 + $0x40] sm:$0xff] %v913
        %930 = vst [vmem:[%s272 + $0x48] sm:$0xff] %v914
        %931 = vst [vmem:[%s272 + $0x50] sm:$0xff] %v915
        %932 = vst [vmem:[%s272 + $0x58] sm:$0xff] %v916
        %933 = vst [vmem:[%s272 + $0x60] sm:$0xff] %v917
        %934 = vst [vmem:[%s272 + $0x68] sm:$0xff] %v918
        %935 = vst [vmem:[%s272 + $0x70] sm:$0xff] %v919
        %936 = vst [vmem:[%s272 + $0x78] sm:$0xff] %v920
        %s937 = sand.u32 %s181, 1
        %s938 = scalar_lea.sflag [#allocation3], %s937
        %s939 = sand.u32 %s181, 1
        %s940 = smul.addr %s939, 128
        %s941 = scalar_lea.vmem [#allocation2], %s940
        // Predicated region
        $region49: #{tpu_custom_call.1} parent=47 // pred_check
          %p942 = pneg %p191
        $region50: #{tpu_custom_call.1} parent=47 // pred_check_branch
          %944 = sbr.rel (%p942) target = $region52
        $region51: #{tpu_custom_call.1} parent=47 // pred_region
          %s945 = smul.u32 16, %s21
          %s947 = ssub.s32 2048, 2048
          %948 = vsyncadd %s938, %s947
          %s949 = smul.addr %s945, 128
          %s950 = scalar_lea.hbm %s7, %s949
          %s951 = sshll.u32 %s941, 4
          %s952 = int_to_ptr.vmem [resolvable:$true] %s951
          %957 = dma.vmem_to_hbm [thread:$0]  %s952, 2048, %s950, %s938, 128, 128, 8
        $region52: #{tpu_custom_call.1} parent=47 // pred_fallthru
          _
      $region48: #{tpu_custom_call.1} parent=5 // pred_fallthru
        _
      %p958 = scmp.le.s32.totalorder 2, %s16
      // Predicated region
      $region53: #{tpu_custom_call.1} parent=5 // pred_check
        %p959 = pneg %p958
      $region54: #{tpu_custom_call.1} parent=5 // pred_check_branch
        %961 = sbr.rel (%p959) target = $region56
      $region55: #{tpu_custom_call.1} parent=5 // pred_region
        %s962 = ssub.s32 %s16, 2
        // Predicated region
        $region57: #{tpu_custom_call.1} parent=55 // pred_check
          %p963 = pneg %p197
        $region58: #{tpu_custom_call.1} parent=55 // pred_check_branch
          %965 = sbr.rel (%p963) target = $region60
        $region59: #{tpu_custom_call.1} parent=55 // pred_region
          %s966 = sand.u32 %s182, 1
          %s967 = scalar_lea.sflag [#allocation3], %s966
          %s968 = sand.u32 %s182, 1
          %s969 = smul.addr %s968, 128
          %s970 = scalar_lea.vmem [#allocation2], %s969
          %971 = dma.done %s967, 2048
        $region60: #{tpu_custom_call.1} parent=55 // pred_fallthru
          _
      $region56: #{tpu_custom_call.1} parent=5 // pred_fallthru
        _
    $region6: #{tpu_custom_call.1} parent=1 // loop_footer
      %s20 = sadd.s32 1, %s16
    $region7: #{tpu_custom_call.1} parent=1 // loop_footer_branch
      %15 = sbr.rel target = $region3
    $region8: #{tpu_custom_call.1} parent=1 // loop_exit
      _
    %972 = vsyncpa [#allocation3], 1
    %s973 = scalar_lea.sflag [#allocation3], 1
    %974 = vsyncpa %s973, 1

</llo_original>
